<compile_context>
chip_gen: v7x
topology: tpu7x:2x2x1
jax: 0.10.0
libtpu: 0.0.40
codegen_flags: <defaults>
</compile_context>

<pallas_src>
import functools

import jax
import jax.numpy as jnp
from jax.experimental import pallas as pl
from jax.experimental.pallas import tpu as pltpu

_IGNORE_INDEX = -100  # PyTorch nn.CrossEntropyLoss default ignore_index


def _cdiv(a, b):
    return (a + b - 1) // b


def _ce_loss_kernel(pred_ref, label_ref, loss_ref, cnt_ref,
                    m_scr, l_scr, p_scr, *,
                    n_total, c_total, tn, tc, need_col_mask):
    # pred_ref : (tn, tc) logits in native dtype (VMEM)
    # label_ref: (tn, 1)  int32 class ids (VMEM)
    # loss_ref : (1, 1, 128) f32  partial loss sum (lane-dense, value broadcast)
    # cnt_ref  : (1, 1, 128) f32  partial valid count
    # m/l/p_scr: (tn, 1) f32 running max / sum-exp / picked-logit accumulators
    i = pl.program_id(0)            # batch-tile index ("parallel")
    j = pl.program_id(1)            # class-tile index (reduction, "arbitrary")

    @pl.when(j == 0)
    def _init():
        m_scr[...] = jnp.full((tn, 1), -jnp.inf, jnp.float32)
        l_scr[...] = jnp.zeros((tn, 1), jnp.float32)
        p_scr[...] = jnp.zeros((tn, 1), jnp.float32)

    logits = pred_ref[...].astype(jnp.float32)       # cast in-kernel (VPU), bf16 streams natively
    labels = label_ref[...]                          # (tn, 1) int32

    # (1, tc) lane iota broadcast against (tn, 1) labels -> no (tn, tc) int32 temporary.
    col_ids = jax.lax.broadcasted_iota(jnp.int32, (1, tc), 1) + j * tc
    if need_col_mask:
        # padded class columns of the last class block must not enter the logsumexp
        logits = jnp.where(col_ids < c_total, logits, -jnp.inf)

    # online (flash-style) logsumexp update
    m_old = m_scr[...]
    m_new = jnp.maximum(m_old, jnp.max(logits, axis=-1, keepdims=True))
    alpha = jnp.exp(m_old - m_new)
    l_scr[...] = alpha * l_scr[...] + jnp.sum(jnp.exp(logits - m_new),
                                              axis=-1, keepdims=True)
    # pred[n, label[n]] accumulated raw (the match happens in exactly one class block);
    # jnp.where *select* keeps -inf/garbage of non-matching columns out.
    p_scr[...] = p_scr[...] + jnp.sum(
        jnp.where(col_ids == labels, logits, 0.0), axis=-1, keepdims=True)
    m_scr[...] = m_new

    @pl.when(j == pl.num_programs(1) - 1)
    def _finalize():
        per_row = m_scr[...] + jnp.log(l_scr[...]) - p_scr[...]         # (tn, 1)
        # mask rows past the end of the batch (padded last row-tile) and ignored labels;
        # must stay a select (NOT a multiply) so NaN/inf from padded rows cannot leak.
        row_ids = jax.lax.broadcasted_iota(jnp.int32, (tn, 1), 0) + i * tn
        valid = (row_ids < n_total) & (labels != _IGNORE_INDEX)
        per_row = jnp.where(valid, per_row, 0.0)
        loss_ref[...] = jnp.full((1, 1, 128), jnp.sum(per_row), jnp.float32)
        cnt_ref[...] = jnp.full((1, 1, 128),
                                jnp.sum(valid.astype(jnp.float32)), jnp.float32)


def _vmem_budget():
    """Generation-aware (tile data budget, vmem_limit_bytes)."""
    phys = 64 << 20                       # conservative default: assume v7x-class VMEM
    try:
        info = pltpu.get_tpu_info()
        phys = int(getattr(info, "vmem_capacity_bytes", phys))
    except Exception:
        pass
    if phys <= (80 << 20):                # v7x-class: 64 MiB physical, 32 MiB scoped default
        return 20 << 20, 30 << 20
    # v5e / v6e: 128 MiB physical -> raise the scoped limit deliberately for big tiles
    return 40 << 20, 56 << 20


def ce_loss(pred, label, *, tn=None, tc=None):
    """pred: [N, C] logits (any float dtype); label: [N] int class ids. Returns scalar f32."""
    n, c = pred.shape
    itemsize = jnp.dtype(pred.dtype).itemsize
    data_budget, vmem_limit = _vmem_budget()

    # ---- class-axis tiling -------------------------------------------------
    # Single (tn, C) block for classification-scale C; lane-aligned class tiles with an
    # online logsumexp once C alone would blow the VMEM budget (LLM-scale vocab).
    if tc is None:
        tc = c if c <= 8192 else 4096
    if tc >= c:
        tc = c
    else:
        tc = max(128, (int(tc) // 128) * 128)      # class blocks must be lane-aligned
    num_ct = _cdiv(c, tc)
    need_col_mask = (num_ct * tc) != c

    # ---- batch-axis tiling (sized by actual dtype against the VMEM budget) --
    if tn is None:
        # per batch-row VMEM bytes: double-buffered pred block + ~4 f32 full-tile temporaries
        # + lane-padded (tn,1) label blocks (x2) + 3 lane-padded f32 scratch accumulators.
        per_row = 2 * tc * itemsize + 4 * tc * 4 + (2 + 3) * 128 * 4
        tn = data_budget // per_row
    tn = max(8, min(8192, (int(tn) // 8) * 8))
    tn = min(tn, ((n + 7) // 8) * 8)               # don't allocate a block larger than needed
    num_rt = _cdiv(n, tn)

    label2d = label.astype(jnp.int32).reshape(n, 1)

    kernel = functools.partial(
        _ce_loss_kernel, n_total=n, c_total=c, tn=tn, tc=tc,
        need_col_mask=need_col_mask)

    loss_p, cnt_p = pl.pallas_call(
        kernel,
        out_shape=(
            jax.ShapeDtypeStruct((num_rt, 1, 128), jnp.float32),
            jax.ShapeDtypeStruct((num_rt, 1, 128), jnp.float32),
        ),
        grid_spec=pltpu.PrefetchScalarGridSpec(
            num_scalar_prefetch=0,
            grid=(num_rt, num_ct),
            in_specs=[
                pl.BlockSpec((tn, tc), lambda i, j: (i, j)),
                pl.BlockSpec((tn, 1), lambda i, j: (i, 0)),
            ],
            out_specs=(
                pl.BlockSpec((1, 1, 128), lambda i, j: (i, 0, 0)),
                pl.BlockSpec((1, 1, 128), lambda i, j: (i, 0, 0)),
            ),
            scratch_shapes=[
                pltpu.VMEM((tn, 1), jnp.float32),   # running max
                pltpu.VMEM((tn, 1), jnp.float32),   # running sum-exp
                pltpu.VMEM((tn, 1), jnp.float32),   # picked logit
            ],
        ),
        compiler_params=pltpu.CompilerParams(
            # batch axis "parallel" -> sharded across both TensorCores on v7x
            # (TODO(synk): evaluate pltpu.CORE_PARALLEL here once verified on v7x traces);
            # class axis is the reduction with resident scratch -> "arbitrary", last in grid.
            dimension_semantics=("parallel", "arbitrary"),
            vmem_limit_bytes=vmem_limit,
        ),
    )(pred, label2d)

    loss_sum = jnp.sum(loss_p[:, 0, 0])
    count = jnp.sum(cnt_p[:, 0, 0])
    # Note: all-ignored labels -> 0/0 = NaN (matches PyTorch); out-of-range labels other than
    # -100 are not bounds-checked (PyTorch raises instead).
    return loss_sum / count


def ce_loss_ref(pred, label):
    # pure-JAX reference (PyTorch nn.CrossEntropyLoss semantics, ignore_index=-100)
    logp = jax.nn.log_softmax(pred.astype(jnp.float32), axis=-1)
    valid = label != _IGNORE_INDEX
    safe_label = jnp.where(valid, label, 0).astype(jnp.int32)
    picked = jnp.take_along_axis(logp, safe_label[:, None], axis=-1)[:, 0]
    losses = jnp.where(valid, -picked, 0.0)
    return jnp.sum(losses) / jnp.sum(valid.astype(jnp.float32))


if __name__ == "__main__":
    key = jax.random.PRNGKey(0)
    k1, k2, k3, k4 = jax.random.split(key, 4)

    # classification-scale case: single class block, 3 row tiles with a padded last tile
    N, C = 20, 32
    pred = jax.random.normal(k1, (N, C), dtype=jnp.float32)
    label = jax.random.randint(k2, (N,), 0, C, dtype=jnp.int32)

    loss = ce_loss(pred, label, tn=8)
    jax.block_until_ready(loss)
    ref = ce_loss_ref(pred, label)
    assert jnp.allclose(loss, ref, atol=1e-5, rtol=1e-5), (loss, ref)

    # ignore_index=-100 rows are excluded from the mean (PyTorch default behavior)
    label_ig = label.at[3].set(-100)
    loss_ig = ce_loss(pred, label_ig, tn=8)
    ref_ig = ce_loss_ref(pred, label_ig)
    assert jnp.allclose(loss_ig, ref_ig, atol=1e-5, rtol=1e-5), (loss_ig, ref_ig)

    # native bf16 logits feed straight in (cast to f32 inside the kernel)
    pred_bf16 = pred.astype(jnp.bfloat16)
    loss_bf = ce_loss(pred_bf16, label, tn=8)
    ref_bf = ce_loss_ref(pred_bf16, label)
    assert jnp.allclose(loss_bf, ref_bf, atol=1e-4, rtol=1e-4), (loss_bf, ref_bf)

    # class-axis (online logsumexp) path: 2 class tiles with a padded last class block
    N2, C2 = 20, 160
    pred2 = jax.random.normal(k3, (N2, C2), dtype=jnp.float32)
    label2 = jax.random.randint(k4, (N2,), 0, C2, dtype=jnp.int32)
    loss2 = ce_loss(pred2, label2, tn=8, tc=128)
    ref2 = ce_loss_ref(pred2, label2)
    assert jnp.allclose(loss2, ref2, atol=1e-5, rtol=1e-5), (loss2, ref2)

    # auto-sized tiles (default, budget-driven path)
    loss_auto = ce_loss(pred, label)
    jax.block_until_ready(loss_auto)
    assert jnp.allclose(loss_auto, ref, atol=1e-5, rtol=1e-5), (loss_auto, ref)

    print("KERNEL_OK")
</pallas_src>

<mosaic_0001>
module attributes {stable_mosaic.version = 11 : i64} {
  func.func @_ce_loss_kernel(%arg0: i32, %arg1: i32, %arg2: memref<8x32xf32, #tpu.memory_space<vmem>>, %arg3: memref<8x1xi32, #tpu.memory_space<vmem>>, %arg4: memref<1x1x128xf32, #tpu.memory_space<vmem>>, %arg5: memref<1x1x128xf32, #tpu.memory_space<vmem>>, %arg6: memref<8x1xf32, #tpu.memory_space<vmem>>, %arg7: memref<8x1xf32, #tpu.memory_space<vmem>>, %arg8: memref<8x1xf32, #tpu.memory_space<vmem>>) attributes {dimension_semantics = [#tpu.dimension_semantics<parallel>, #tpu.dimension_semantics<arbitrary>], iteration_bounds = array<i64: 3, 1>, scalar_prefetch = 0 : i64, scratch_operands = 3 : i64, tpu.core_type = #tpu.core_type<tc>, window_params = [{transform_indices = @transform_0, window_bounds = array<i64: 8, 32>}, {transform_indices = @transform_1, window_bounds = array<i64: 8, 1>}, {transform_indices = @transform_2, window_bounds = array<i64: 1, 1, 128>}, {transform_indices = @transform_3, window_bounds = array<i64: 1, 1, 128>}]} {
    %c0_i32 = arith.constant 0 : i32
    %0 = arith.cmpi eq, %arg1, %c0_i32 : i32
    %1 = arith.extui %0 : i1 to i32
    %c0_i32_0 = arith.constant 0 : i32
    %2 = arith.cmpi ne, %1, %c0_i32_0 : i32
    scf.if %2 {
      %cst_21 = arith.constant 0xFF800000 : f32
      %38 = vector.broadcast %cst_21 : f32 to vector<8x1xf32>
      %c0_22 = arith.constant 0 : index
      %c0_23 = arith.constant 0 : index
      %39 = vector.load %arg6[%c0_22, %c0_23] : memref<8x1xf32, #tpu.memory_space<vmem>>, vector<8x1xf32>
      tpu.vector_store %arg6[%c0_22, %c0_23], %38 {strides = array<i32>} : memref<8x1xf32, #tpu.memory_space<vmem>>, vector<8x1xf32>,
      %cst_24 = arith.constant 0.000000e+00 : f32
      %40 = vector.broadcast %cst_24 : f32 to vector<8x1xf32>
      %c0_25 = arith.constant 0 : index
      %c0_26 = arith.constant 0 : index
      %41 = vector.load %arg7[%c0_25, %c0_26] : memref<8x1xf32, #tpu.memory_space<vmem>>, vector<8x1xf32>
      tpu.vector_store %arg7[%c0_25, %c0_26], %40 {strides = array<i32>} : memref<8x1xf32, #tpu.memory_space<vmem>>, vector<8x1xf32>,
      %cst_27 = arith.constant 0.000000e+00 : f32
      %42 = vector.broadcast %cst_27 : f32 to vector<8x1xf32>
      %c0_28 = arith.constant 0 : index
      %c0_29 = arith.constant 0 : index
      %43 = vector.load %arg8[%c0_28, %c0_29] : memref<8x1xf32, #tpu.memory_space<vmem>>, vector<8x1xf32>
      tpu.vector_store %arg8[%c0_28, %c0_29], %42 {strides = array<i32>} : memref<8x1xf32, #tpu.memory_space<vmem>>, vector<8x1xf32>,
    } else {
    }
    %c0 = arith.constant 0 : index
    %c0_1 = arith.constant 0 : index
    %3 = vector.load %arg2[%c0, %c0_1] : memref<8x32xf32, #tpu.memory_space<vmem>>, vector<8x32xf32>
    %c0_2 = arith.constant 0 : index
    %c0_3 = arith.constant 0 : index
    %4 = vector.load %arg3[%c0_2, %c0_3] : memref<8x1xi32, #tpu.memory_space<vmem>>, vector<8x1xi32>
    %5 = tpu.iota {dimensions = array<i32: 1>} : vector<1x32xi32>
    %c32_i32 = arith.constant 32 : i32
    %6 = arith.muli %arg1, %c32_i32 : i32
    %7 = vector.broadcast %6 : i32 to vector<1x32xi32>
    %8 = arith.addi %5, %7 : vector<1x32xi32>
    %c0_4 = arith.constant 0 : index
    %c0_5 = arith.constant 0 : index
    %9 = vector.load %arg6[%c0_4, %c0_5] : memref<8x1xf32, #tpu.memory_space<vmem>>, vector<8x1xf32>
    %cst = arith.constant dense<0xFF800000> : vector<8xf32>
    %10 = vector.multi_reduction <maximumf>, %3, %cst [1] : vector<8x32xf32> to vector<8xf32>
    %11 = vector.shape_cast %10 : vector<8xf32> to vector<8x1xf32>
    %12 = arith.maximumf %9, %11 : vector<8x1xf32>
    %13 = arith.subf %9, %12 : vector<8x1xf32>
    %14 = math.exp %13 : vector<8x1xf32>
    %c0_6 = arith.constant 0 : index
    %c0_7 = arith.constant 0 : index
    %15 = vector.load %arg7[%c0_6, %c0_7] : memref<8x1xf32, #tpu.memory_space<vmem>>, vector<8x1xf32>
    %16 = arith.mulf %14, %15 : vector<8x1xf32>
    %17 = vector.broadcast %12 : vector<8x1xf32> to vector<8x32xf32>
    %18 = arith.subf %3, %17 : vector<8x32xf32>
    %19 = math.exp %18 : vector<8x32xf32>
    %cst_8 = arith.constant dense<0.000000e+00> : vector<8xf32>
    %20 = vector.multi_reduction <add>, %19, %cst_8 [1] : vector<8x32xf32> to vector<8xf32>
    %21 = vector.shape_cast %20 : vector<8xf32> to vector<8x1xf32>
    %22 = arith.addf %16, %21 : vector<8x1xf32>
    %c0_9 = arith.constant 0 : index
    %c0_10 = arith.constant 0 : index
    %23 = vector.load %arg7[%c0_9, %c0_10] : memref<8x1xf32, #tpu.memory_space<vmem>>, vector<8x1xf32>
    tpu.vector_store %arg7[%c0_9, %c0_10], %22 {strides = array<i32>} : memref<8x1xf32, #tpu.memory_space<vmem>>, vector<8x1xf32>,
    %c0_11 = arith.constant 0 : index
    %c0_12 = arith.constant 0 : index
    %24 = vector.load %arg8[%c0_11, %c0_12] : memref<8x1xf32, #tpu.memory_space<vmem>>, vector<8x1xf32>
    %25 = vector.broadcast %8 : vector<1x32xi32> to vector<8x32xi32>
    %26 = vector.broadcast %4 : vector<8x1xi32> to vector<8x32xi32>
    %27 = arith.cmpi eq, %25, %26 : vector<8x32xi32>
    %cst_13 = arith.constant 0.000000e+00 : f32
    %28 = vector.broadcast %cst_13 : f32 to vector<8x32xf32>
    %29 = arith.select %27, %3, %28 : vector<8x32xi1>, vector<8x32xf32>
    %cst_14 = arith.constant dense<0.000000e+00> : vector<8xf32>
    %30 = vector.multi_reduction <add>, %29, %cst_14 [1] : vector<8x32xf32> to vector<8xf32>
    %31 = vector.shape_cast %30 : vector<8xf32> to vector<8x1xf32>
    %32 = arith.addf %24, %31 : vector<8x1xf32>
    %c0_15 = arith.constant 0 : index
    %c0_16 = arith.constant 0 : index
    %33 = vector.load %arg8[%c0_15, %c0_16] : memref<8x1xf32, #tpu.memory_space<vmem>>, vector<8x1xf32>
    tpu.vector_store %arg8[%c0_15, %c0_16], %32 {strides = array<i32>} : memref<8x1xf32, #tpu.memory_space<vmem>>, vector<8x1xf32>,
    %c0_17 = arith.constant 0 : index
    %c0_18 = arith.constant 0 : index
    %34 = vector.load %arg6[%c0_17, %c0_18] : memref<8x1xf32, #tpu.memory_space<vmem>>, vector<8x1xf32>
    tpu.vector_store %arg6[%c0_17, %c0_18], %12 {strides = array<i32>} : memref<8x1xf32, #tpu.memory_space<vmem>>, vector<8x1xf32>,
    %c0_i32_19 = arith.constant 0 : i32
    %35 = arith.cmpi eq, %arg1, %c0_i32_19 : i32
    %36 = arith.extui %35 : i1 to i32
    %c0_i32_20 = arith.constant 0 : i32
    %37 = arith.cmpi ne, %36, %c0_i32_20 : i32
    scf.if %37 {
      %c0_21 = arith.constant 0 : index
      %c0_22 = arith.constant 0 : index
      %38 = vector.load %arg6[%c0_21, %c0_22] : memref<8x1xf32, #tpu.memory_space<vmem>>, vector<8x1xf32>
      %c0_23 = arith.constant 0 : index
      %c0_24 = arith.constant 0 : index
      %39 = vector.load %arg7[%c0_23, %c0_24] : memref<8x1xf32, #tpu.memory_space<vmem>>, vector<8x1xf32>
      %40 = math.log %39 : vector<8x1xf32>
      %41 = arith.addf %38, %40 : vector<8x1xf32>
      %c0_25 = arith.constant 0 : index
      %c0_26 = arith.constant 0 : index
      %42 = vector.load %arg8[%c0_25, %c0_26] : memref<8x1xf32, #tpu.memory_space<vmem>>, vector<8x1xf32>
      %43 = arith.subf %41, %42 : vector<8x1xf32>
      %44 = tpu.iota {dimensions = array<i32: 0>} : vector<8x1xi32>
      %c8_i32 = arith.constant 8 : i32
      %45 = arith.muli %arg0, %c8_i32 : i32
      %46 = vector.broadcast %45 : i32 to vector<8x1xi32>
      %47 = arith.addi %44, %46 : vector<8x1xi32>
      %c20_i32 = arith.constant 20 : i32
      %48 = vector.broadcast %c20_i32 : i32 to vector<8x1xi32>
      %49 = arith.cmpi slt, %47, %48 : vector<8x1xi32>
      %c-100_i32 = arith.constant -100 : i32
      %50 = vector.broadcast %c-100_i32 : i32 to vector<8x1xi32>
      %51 = arith.cmpi ne, %4, %50 : vector<8x1xi32>
      %52 = arith.andi %49, %51 : vector<8x1xi1>
      %cst_27 = arith.constant 0.000000e+00 : f32
      %53 = vector.broadcast %cst_27 : f32 to vector<8x1xf32>
      %54 = arith.select %52, %43, %53 : vector<8x1xi1>, vector<8x1xf32>
      %55 = vector.shape_cast %54 : vector<8x1xf32> to vector<1x8x1xf32>
      %cst_28 = arith.constant dense<0.000000e+00> : vector<1xf32>
      %56 = vector.multi_reduction <add>, %55, %cst_28 [1, 2] : vector<1x8x1xf32> to vector<1xf32>
      %57 = vector.shape_cast %56 : vector<1xf32> to vector<1x1x1xf32>
      %58 = vector.extract %57[0, 0, 0] : f32 from vector<1x1x1xf32>
      %59 = vector.broadcast %58 : f32 to vector<1x1x128xf32>
      %c0_29 = arith.constant 0 : index
      %c0_30 = arith.constant 0 : index
      %c0_31 = arith.constant 0 : index
      %60 = vector.load %arg4[%c0_29, %c0_30, %c0_31] : memref<1x1x128xf32, #tpu.memory_space<vmem>>, vector<1x1x128xf32>
      tpu.vector_store %arg4[%c0_29, %c0_30, %c0_31], %59 {strides = array<i32>} : memref<1x1x128xf32, #tpu.memory_space<vmem>>, vector<1x1x128xf32>,
      %61 = arith.extui %52 : vector<8x1xi1> to vector<8x1xi32>
      %62 = arith.sitofp %61 : vector<8x1xi32> to vector<8x1xf32>
      %63 = vector.shape_cast %62 : vector<8x1xf32> to vector<1x8x1xf32>
      %cst_32 = arith.constant dense<0.000000e+00> : vector<1xf32>
      %64 = vector.multi_reduction <add>, %63, %cst_32 [1, 2] : vector<1x8x1xf32> to vector<1xf32>
      %65 = vector.shape_cast %64 : vector<1xf32> to vector<1x1x1xf32>
      %66 = vector.extract %65[0, 0, 0] : f32 from vector<1x1x1xf32>
      %67 = vector.broadcast %66 : f32 to vector<1x1x128xf32>
      %c0_33 = arith.constant 0 : index
      %c0_34 = arith.constant 0 : index
      %c0_35 = arith.constant 0 : index
      %68 = vector.load %arg5[%c0_33, %c0_34, %c0_35] : memref<1x1x128xf32, #tpu.memory_space<vmem>>, vector<1x1x128xf32>
      tpu.vector_store %arg5[%c0_33, %c0_34, %c0_35], %67 {strides = array<i32>} : memref<1x1x128xf32, #tpu.memory_space<vmem>>, vector<1x1x128xf32>,
    } else {
    }
    return
  }
  func.func @transform_0(%arg0: i32, %arg1: i32) -> (i32, i32) {
    %c0_i32 = arith.constant 0 : i32
    return %arg0, %arg1 : i32, i32
  }
  func.func @transform_1(%arg0: i32, %arg1: i32) -> (i32, i32) {
    %c0_i32 = arith.constant 0 : i32
    %c0_i32_0 = arith.constant 0 : i32
    return %arg0, %c0_i32 : i32, i32
  }
  func.func @transform_2(%arg0: i32, %arg1: i32) -> (i32, i32, i32) {
    %c0_i32 = arith.constant 0 : i32
    %c0_i32_0 = arith.constant 0 : i32
    %c0_i32_1 = arith.constant 0 : i32
    return %arg0, %c0_i32, %c0_i32_0 : i32, i32, i32
  }
  func.func @transform_3(%arg0: i32, %arg1: i32) -> (i32, i32, i32) {
    %c0_i32 = arith.constant 0 : i32
    %c0_i32_0 = arith.constant 0 : i32
    %c0_i32_1 = arith.constant 0 : i32
    return %arg0, %c0_i32, %c0_i32_0 : i32, i32, i32
  }
}

</mosaic_0001>

<llo_original>
// kernel: tpu_custom_call.1
$region0: #{tpu_custom_call.1}
  #allocation0 [shape = 'u32[]', space=smem, size = 0x4, offset = 0x4, fixed_abs, tag = 'smem constant byte address 0x4 - core index']
  #allocation1 [shape = 'u32[144,128]{1,0:T(1,128)}', space=vmem, size = 0x12000, scoped, tag = 'internal scratch']
  #allocation2 [shape = 'f32[8,1]{1,0:T(8,128)}', space=vmem, size = 0x1000, scoped, tag = 'scratch operand']
  #allocation3 [shape = 'f32[8,1]{1,0:T(8,128)}', space=vmem, size = 0x1000, scoped, tag = 'scratch operand']
  #allocation4 [shape = 'f32[8,1]{1,0:T(8,128)}', space=vmem, size = 0x1000, scoped, tag = 'scratch operand']
  %s0 = inlined_call_operand.vmem [shape: f32[20,32], index: 0, kind: input, shape index: {}]
  %s1 = inlined_call_operand.vmem [shape: s32[20,1], index: 1, kind: input, shape index: {}]
  %s2 = inlined_call_operand.hbm [shape: f32[3,1,128], index: 2, kind: output, shape index: {0}]
  %s3 = inlined_call_operand.hbm [shape: f32[3,1,128], index: 3, kind: output, shape index: {1}]
  %4 = xla_tuple %s2, %s3
  %s5 = sld [smem:[#allocation0]]
  $region57: #{tpu_custom_call.1} parent=0
    _
  %s7 = ssub.s32 1, %s5
  %s8 = scalar_select 0, %s7, %s5
  $region1: #{tpu_custom_call.1} parent=0
    #allocation5 [shape = 'u8[1024]{0}', space=vmem, size = 0x400, scoped, tag = 'output window, operand 0']
    #allocation6 [shape = 's32[2]{0}', space=sflag, size = 0x8, scoped, tag = 'scoped memory for tpu_custom_call.1']
    #allocation7 [shape = 'u8[1024]{0}', space=vmem, size = 0x400, scoped, tag = 'output window, operand 1']
    #allocation8 [shape = 's32[2]{0}', space=sflag, size = 0x8, scoped, tag = 'scoped memory for tpu_custom_call.1']
    %9 = vsyncpa [#allocation6], 0
    %s10 = scalar_lea.sflag [#allocation6], 1
    %11 = vsyncpa %s10, 0
    %12 = vsyncpa [#allocation8], 0
    %s13 = scalar_lea.sflag [#allocation8], 1
    %14 = vsyncpa %s13, 0
    loop: start=0, step=1, limit=5
    $region2: #{tpu_custom_call.1} parent=1 // loop_pre_header
      _
    $region3: #{tpu_custom_call.1} parent=1 // loop_header
      %s16 = sphi 0, %s20
      %p17 = scmp.ge.s32.totalorder %s16, 5
      %s23 = sphi 0, %s35
      %s24 = sphi 0, %s31
      %s25 = sphi 0, %s23
      %s26 = sphi 0, %s24
      %s27 = sphi 0, %s25
      %s28 = sphi 0, %s26
      %s40 = sphi 0, %s42
      %s43 = sphi 0, %s40
      %s44 = sphi 0, %s43
      %s60 = sphi 0, %s44
      %s66 = sphi 0, %s68
      %s69 = sphi 0, %s66
      %s70 = sphi 0, %s69
      %s86 = sphi 0, %s70
      %s92 = sphi 0, %s94
      %s95 = sphi 0, %s92
      %s96 = sphi 0, %s95
      %s112 = sphi 0, %s96
      %s118 = sphi 0, %s120
      %s121 = sphi 0, %s118
      %s122 = sphi 0, %s121
      %s138 = sphi 0, %s122
    $region4: #{tpu_custom_call.1} parent=1 // loop_header_branch
      %19 = sbr.rel (%p17) target = $region8
    $region5: #{tpu_custom_call.1} parent=1 // loop_body
      %s21 = ssub.s32 %s16, 1
      %s22 = ssub.s32 %s16, 2
      %s29 = sadd.s32 1, %s24
      %p30 = scmp.ge.s32.totalorder %s29, 1
      %s31 = scalar_select %p30, 0, %s29
      %s32 = sadd.s32 1, %s23
      %s33 = scalar_select %p30, %s32, %s23
      %p34 = scmp.ge.s32.totalorder %s33, 3
      %s35 = scalar_select %p34, 0, %s33
      %s36 = ssub.s32 %s23, %s35
      %s37 = ssub.s32 %s24, %s31
      %s38 = sor.u32 %s36, %s37
      %p39 = scmp.eq.s32.totalorder %s38, 0
      %s41 = sadd.s32 %s40, 1
      %s42 = scalar_select %p39, %s40, %s41
      %p45 = pneg %p39
      %p46 = scmp.eq.s32.totalorder %s16, 2
      %p47 = por %p45, %p46
      %p48 = scmp.ne.s32.totalorder %s40, %s43
      %p49 = scmp.eq.s32.totalorder %s16, 0
      %p50 = por %p48, %p49
      %p51 = scmp.ne.s32.totalorder %s40, %s43
      %p52 = scmp.eq.s32.totalorder %s21, 2
      %p53 = por %p51, %p52
      %p54 = scmp.ne.s32.totalorder %s43, %s44
      %p55 = scmp.eq.s32.totalorder %s21, 0
      %p56 = por %p54, %p55
      %p57 = scmp.ne.s32.totalorder %s43, %s44
      %p58 = scmp.eq.s32.totalorder %s22, 2
      %p59 = por %p57, %p58
      %p61 = scmp.ne.s32.totalorder %s44, %s60
      %p62 = scmp.eq.s32.totalorder %s22, 0
      %p63 = por %p61, %p62
      %s64 = ssub.s32 %s23, %s35
      %p65 = scmp.eq.s32.totalorder %s64, 0
      %s67 = sadd.s32 %s66, 1
      %s68 = scalar_select %p65, %s66, %s67
      %p71 = pneg %p65
      %p72 = scmp.eq.s32.totalorder %s16, 2
      %p73 = por %p71, %p72
      %p74 = scmp.ne.s32.totalorder %s66, %s69
      %p75 = scmp.eq.s32.totalorder %s16, 0
      %p76 = por %p74, %p75
      %p77 = scmp.ne.s32.totalorder %s66, %s69
      %p78 = scmp.eq.s32.totalorder %s21, 2
      %p79 = por %p77, %p78
      %p80 = scmp.ne.s32.totalorder %s69, %s70
      %p81 = scmp.eq.s32.totalorder %s21, 0
      %p82 = por %p80, %p81
      %p83 = scmp.ne.s32.totalorder %s69, %s70
      %p84 = scmp.eq.s32.totalorder %s22, 2
      %p85 = por %p83, %p84
      %p87 = scmp.ne.s32.totalorder %s70, %s86
      %p88 = scmp.eq.s32.totalorder %s22, 0
      %p89 = por %p87, %p88
      %s90 = ssub.s32 %s23, %s35
      %p91 = scmp.eq.s32.totalorder %s90, 0
      %s93 = sadd.s32 %s92, 1
      %s94 = scalar_select %p91, %s92, %s93
      %p97 = pneg %p91
      %p98 = scmp.eq.s32.totalorder %s16, 2
      %p99 = por %p97, %p98
      %p100 = scmp.ne.s32.totalorder %s92, %s95
      %p101 = scmp.eq.s32.totalorder %s16, 0
      %p102 = por %p100, %p101
      %p103 = scmp.ne.s32.totalorder %s92, %s95
      %p104 = scmp.eq.s32.totalorder %s21, 2
      %p105 = por %p103, %p104
      %p106 = scmp.ne.s32.totalorder %s95, %s96
      %p107 = scmp.eq.s32.totalorder %s21, 0
      %p108 = por %p106, %p107
      %p109 = scmp.ne.s32.totalorder %s95, %s96
      %p110 = scmp.eq.s32.totalorder %s22, 2
      %p111 = por %p109, %p110
      %p113 = scmp.ne.s32.totalorder %s96, %s112
      %p114 = scmp.eq.s32.totalorder %s22, 0
      %p115 = por %p113, %p114
      %s116 = ssub.s32 %s23, %s35
      %p117 = scmp.eq.s32.totalorder %s116, 0
      %s119 = sadd.s32 %s118, 1
      %s120 = scalar_select %p117, %s118, %s119
      %p123 = pneg %p117
      %p124 = scmp.eq.s32.totalorder %s16, 2
      %p125 = por %p123, %p124
      %p126 = scmp.ne.s32.totalorder %s118, %s121
      %p127 = scmp.eq.s32.totalorder %s16, 0
      %p128 = por %p126, %p127
      %p129 = scmp.ne.s32.totalorder %s118, %s121
      %p130 = scmp.eq.s32.totalorder %s21, 2
      %p131 = por %p129, %p130
      %p132 = scmp.ne.s32.totalorder %s121, %s122
      %p133 = scmp.eq.s32.totalorder %s21, 0
      %p134 = por %p132, %p133
      %p135 = scmp.ne.s32.totalorder %s121, %s122
      %p136 = scmp.eq.s32.totalorder %s22, 2
      %p137 = por %p135, %p136
      %p139 = scmp.ne.s32.totalorder %s122, %s138
      %p140 = scmp.eq.s32.totalorder %s22, 0
      %p141 = por %p139, %p140
      %p142 = scmp.le.s32.totalorder 1, %s16
      %p143 = scmp.lt.s32.totalorder %s16, 4
      %p144 = pnand %p142, %p143
      %p145 = pneg %p144
      // Predicated region
      $region9: #{tpu_custom_call.1} parent=5 // pred_check
        _
      $region10: #{tpu_custom_call.1} parent=5 // pred_check_branch
        %147 = sbr.rel (%p144) target = $region12
      $region11: #{tpu_custom_call.1} parent=5 // pred_region
        %s148 = ssub.s32 %s16, 1
      $region12: #{tpu_custom_call.1} parent=5 // pred_fallthru
        _
      %p149 = scmp.lt.s32.totalorder %s16, 3
      // Predicated region
      $region13: #{tpu_custom_call.1} parent=5 // pred_check
        %p150 = pneg %p149
      $region14: #{tpu_custom_call.1} parent=5 // pred_check_branch
        %152 = sbr.rel (%p150) target = $region16
      $region15: #{tpu_custom_call.1} parent=5 // pred_region
        // Predicated region
        $region17: #{tpu_custom_call.1} parent=15 // pred_check
          %p153 = pneg %p50
        $region18: #{tpu_custom_call.1} parent=15 // pred_check_branch
          %155 = sbr.rel (%p153) target = $region20
        $region19: #{tpu_custom_call.1} parent=15 // pred_region
          %p156 = scmp.lt.s32.totalorder %s23, 2
          %s157 = scalar_select %p156, %s23, 2
          %p158 = scmp.lt.s32.totalorder %s24, 0
          %s159 = scalar_select %p158, %s24, 0
          %s160 = sadd.s32 %s159, %s157
          %s161 = smul.addr %s160, 8
          %s162 = scalar_lea.vmem %s0, %s161
        $region20: #{tpu_custom_call.1} parent=15 // pred_fallthru
          _
        // Predicated region
        $region21: #{tpu_custom_call.1} parent=15 // pred_check
          %p163 = pneg %p76
        $region22: #{tpu_custom_call.1} parent=15 // pred_check_branch
          %165 = sbr.rel (%p163) target = $region24
        $region23: #{tpu_custom_call.1} parent=15 // pred_region
          %p166 = scmp.lt.s32.totalorder %s23, 2
          %s167 = scalar_select %p166, %s23, 2
          %s168 = smul.addr %s167, 8
          %s169 = scalar_lea.vmem %s1, %s168
        $region24: #{tpu_custom_call.1} parent=15 // pred_fallthru
          _
      $region16: #{tpu_custom_call.1} parent=5 // pred_fallthru
        _
      %p170 = scmp.le.s32.totalorder 1, %s16
      %p171 = scmp.lt.s32.totalorder %s16, 4
      %p172 = pnand %p170, %p171
      %p173 = pneg %p172
      // Predicated region
      $region25: #{tpu_custom_call.1} parent=5 // pred_check
        _
      $region26: #{tpu_custom_call.1} parent=5 // pred_check_branch
        %175 = sbr.rel (%p172) target = $region28
      $region27: #{tpu_custom_call.1} parent=5 // pred_region
        %s176 = ssub.s32 %s16, 1
        %p177 = scmp.lt.s32.totalorder %s25, 2
        %s178 = scalar_select %p177, %s25, 2
        %p179 = scmp.lt.s32.totalorder %s26, 0
        %s180 = scalar_select %p179, %s26, 0
        %s181 = sadd.s32 %s180, %s178
        %s182 = smul.addr %s181, 8
        %s183 = scalar_lea.vmem %s0, %s182
        %p184 = pneg %p56
        %p185 = pneg %p53
        %p186 = scmp.lt.s32.totalorder %s25, 2
        %s187 = scalar_select %p186, %s25, 2
        %s188 = smul.addr %s187, 8
        %s189 = scalar_lea.vmem %s1, %s188
        %p190 = pneg %p82
        %p191 = pneg %p79
        %p192 = pneg %p108
        %p193 = pneg %p105
        %s194 = sand.u32 %s95, 1
        %s195 = scalar_lea.sflag [#allocation6], %s194
        %s196 = sand.u32 %s95, 1
        %s197 = scalar_lea.vmem [#allocation5], %s196
        %p198 = pneg %p134
        %p199 = pneg %p131
        %s200 = sand.u32 %s121, 1
        %s201 = scalar_lea.sflag [#allocation8], %s200
        %s202 = sand.u32 %s121, 1
        %s203 = scalar_lea.vmem [#allocation7], %s202
        %p204 = scmp.lt.s32.totalorder %s25, 2
        %s205 = scalar_select %p204, %s25, 2
        %p206 = scmp.lt.s32.totalorder %s26, 0
        %s207 = scalar_select %p206, %s26, 0
        %s208 = sadd.s32 %s207, %s205
        %s209 = smul.addr %s208, 8
        %s210 = scalar_lea.vmem %s0, %s209
        %p211 = scmp.lt.s32.totalorder %s25, 2
        %s212 = scalar_select %p211, %s25, 2
        %s213 = smul.addr %s212, 8
        %s214 = scalar_lea.vmem %s1, %s213
        %p215 = scmp.eq.s32.totalorder %s26, 0
        // Predicated region
        $region29: #{tpu_custom_call.1} parent=27 // pred_check
          %p216 = pneg %p215
        $region30: #{tpu_custom_call.1} parent=27 // pred_check_branch
          %218 = sbr.rel (%p216) target = $region32
        $region31: #{tpu_custom_call.1} parent=27 // pred_region
          %vm219 = vcmask 7168
          %220 = vst.msk [vmem:[#allocation2] sm:$0xff] %vm219, -inf
          %221 = vst.msk [vmem:[#allocation3] sm:$0xff] %vm219, 0.0
          %222 = vst.msk [vmem:[#allocation4] sm:$0xff] %vm219, 0.0
        $region32: #{tpu_custom_call.1} parent=27 // pred_fallthru
          _
        %v223 = vld [vmem:[%s210] sm:$0xff]
        %v224 = vld [vmem:[%s214] sm:$0xff]
        %v225 = vlaneseq
        %v226 = vand.u32 %v225, 127
        %s227 = smul.u32 %s26, 32
        %v228 = vstv %s227
        %v229 = vadd.s32 %v226, %v228
        %v230 = vld [vmem:[#allocation2] sm:$0xff]
        %vm231 = vcmask 261120
        %v232 = vsel %vm231, %v223, -inf
        %233 = vmax.xlane.f32.xlu0 %v232
        %v234 = vpop.xlane.xlu0 %233
        %v235 = vmax.f32 %v230, %v234
        %v236 = vsub.f32 %v230, %v235
        %v237 = vmul.f32 %v236, 1.442695
        %v238 = vpow.pop %v237
        %v239 = vld [vmem:[#allocation3] sm:$0xff]
        %v240 = vmul.f32 %v238, %v239
        %242 = vset.pattern.permute.xlu0 0
        %243 = vperm.xlu0 %242, %v235
        %v244 = vpop.permute.xlu0 %243
        %v246 = vsub.f32 %v223, %v244
        %v247 = vmul.f32 %v246, 1.442695
        %v248 = vpow.pop %v247
        %v249 = vsel %vm231, %v248, 0.0
        %250 = vadd.xlane.f32.xlu0 %v249
        %v251 = vpop.xlane.xlu0 %250
        %v252 = vadd.f32 %v240, %v251
        %vm253 = vcmask 7168
        %254 = vst.msk [vmem:[#allocation3] sm:$0xff] %vm253, %v252
        %v255 = vld [vmem:[#allocation4] sm:$0xff]
        %256 = vset.pattern.permute.xlu0 0
        %257 = vperm.xlu0 %256, %v224
        %v258 = vpop.permute.xlu0 %257
        %vm259 = vcmp.eq.s32.totalorder %v229, %v258
        %v260 = vsel %vm259, %v223, 0.0
        %v261 = vsel %vm231, %v260, 0.0
        %262 = vadd.xlane.f32.xlu0 %v261
        %v263 = vpop.xlane.xlu0 %262
        %v264 = vadd.f32 %v255, %v263
        %265 = vst.msk [vmem:[#allocation4] sm:$0xff] %vm253, %v264
        %266 = vst.msk [vmem:[#allocation2] sm:$0xff] %vm253, %v235
        // Predicated region
        $region33: #{tpu_custom_call.1} parent=27 // pred_check
          %p267 = pneg %p215
        $region34: #{tpu_custom_call.1} parent=27 // pred_check_branch
          %269 = sbr.rel (%p267) target = $region36
        $region35: #{tpu_custom_call.1} parent=27 // pred_region
          %v270 = vld [vmem:[#allocation2] sm:$0xff]
          %v271 = vld [vmem:[#allocation3] sm:$0xff]
          %v272 = vlog2.pop %v271
          %v273 = vmul.f32 %v272, 0.6931472
          %v274 = vadd.f32 %v270, %v273
          %v275 = vld [vmem:[#allocation4] sm:$0xff]
          %v276 = vsub.f32 %v274, %v275
          %v277 = vlaneseq
          %v278 = vshrl.u32 %v277, 7
          %s279 = smul.u32 %s25, 8
          %v280 = vstv %s279
          %v281 = vadd.s32 %v278, %v280
          %vm282 = vcmp.lt.s32.totalorder %v281, 20
          %vm283 = vcmp.ne.s32.totalorder %v224, 4294967196
          %vm284 = vmand %vm282, %vm283
          %v285 = vsel %vm284, %v276, 0.0
          %v286 = vsel %vm253, %v285, 0.0
          %287 = vadd.xlane.f32.xlu0 %v286
          %v288 = vpop.xlane.xlu0 %287
          %v289 = vrot.slane %v288, 4
          %v290 = vadd.f32 %v288, %v289
          %v291 = vrot.slane %v290, 2
          %v292 = vadd.f32 %v290, %v291
          %v293 = vrot.slane %v292, 1
          %v294 = vadd.f32 %v292, %v293
          %s295 = vtos %v294
          %v296 = vstv %s295
          %297 = vst [vmem:[%s197] sm:$0x1] %v296
          %v298 = vsel %vm284, 1, 0
          %v299 = vcvt.s32.f32 %v298
          %v300 = vsel %vm253, %v299, 0.0
          %301 = vadd.xlane.f32.xlu0 %v300
          %v302 = vpop.xlane.xlu0 %301
          %v303 = vrot.slane %v302, 4
          %v304 = vadd.f32 %v302, %v303
          %v305 = vrot.slane %v304, 2
          %v306 = vadd.f32 %v304, %v305
          %v307 = vrot.slane %v306, 1
          %v308 = vadd.f32 %v306, %v307
          %s309 = vtos %v308
          %v310 = vstv %s309
          %311 = vst [vmem:[%s203] sm:$0x1] %v310
        $region36: #{tpu_custom_call.1} parent=27 // pred_fallthru
          _
        %s312 = sand.u32 %s95, 1
        %s313 = scalar_lea.sflag [#allocation6], %s312
        %s314 = sand.u32 %s95, 1
        %s315 = scalar_lea.vmem [#allocation5], %s314
        %s316 = sand.u32 %s121, 1
        %s317 = scalar_lea.sflag [#allocation8], %s316
        %s318 = sand.u32 %s121, 1
        %s319 = scalar_lea.vmem [#allocation7], %s318
        // Predicated region
        $region37: #{tpu_custom_call.1} parent=27 // pred_check
          %p320 = pneg %p105
        $region38: #{tpu_custom_call.1} parent=27 // pred_check_branch
          %322 = sbr.rel (%p320) target = $region40
        $region39: #{tpu_custom_call.1} parent=27 // pred_region
          %s324 = ssub.s32 16, 16
          %325 = vsyncadd %s313, %s324
          %s326 = smul.addr %s25, 16
          %s327 = scalar_lea.hbm %s2, %s326
          %s329 = sshll.u32 %s315, 4
          %s330 = int_to_ptr.vmem [resolvable:$true] %s329
          %332 = dma.vmem_to_hbm [thread:$0]  %s330, 16, %s327, %s313
        $region40: #{tpu_custom_call.1} parent=27 // pred_fallthru
          _
        // Predicated region
        $region41: #{tpu_custom_call.1} parent=27 // pred_check
          %p333 = pneg %p131
        $region42: #{tpu_custom_call.1} parent=27 // pred_check_branch
          %335 = sbr.rel (%p333) target = $region44
        $region43: #{tpu_custom_call.1} parent=27 // pred_region
          %s337 = ssub.s32 16, 16
          %338 = vsyncadd %s317, %s337
          %s339 = smul.addr %s25, 16
          %s340 = scalar_lea.hbm %s3, %s339
          %s342 = sshll.u32 %s319, 4
          %s343 = int_to_ptr.vmem [resolvable:$true] %s342
          %345 = dma.vmem_to_hbm [thread:$0]  %s343, 16, %s340, %s317
        $region44: #{tpu_custom_call.1} parent=27 // pred_fallthru
          _
      $region28: #{tpu_custom_call.1} parent=5 // pred_fallthru
        _
      %p346 = scmp.le.s32.totalorder 2, %s16
      // Predicated region
      $region45: #{tpu_custom_call.1} parent=5 // pred_check
        %p347 = pneg %p346
      $region46: #{tpu_custom_call.1} parent=5 // pred_check_branch
        %349 = sbr.rel (%p347) target = $region48
      $region47: #{tpu_custom_call.1} parent=5 // pred_region
        %s350 = ssub.s32 %s16, 2
        // Predicated region
        $region49: #{tpu_custom_call.1} parent=47 // pred_check
          %p351 = pneg %p111
        $region50: #{tpu_custom_call.1} parent=47 // pred_check_branch
          %353 = sbr.rel (%p351) target = $region52
        $region51: #{tpu_custom_call.1} parent=47 // pred_region
          %s354 = sand.u32 %s96, 1
          %s355 = scalar_lea.sflag [#allocation6], %s354
          %s356 = sand.u32 %s96, 1
          %s357 = scalar_lea.vmem [#allocation5], %s356
          %358 = dma.done %s355, 16
        $region52: #{tpu_custom_call.1} parent=47 // pred_fallthru
          _
        // Predicated region
        $region53: #{tpu_custom_call.1} parent=47 // pred_check
          %p359 = pneg %p137
        $region54: #{tpu_custom_call.1} parent=47 // pred_check_branch
          %361 = sbr.rel (%p359) target = $region56
        $region55: #{tpu_custom_call.1} parent=47 // pred_region
          %s362 = sand.u32 %s122, 1
          %s363 = scalar_lea.sflag [#allocation8], %s362
          %s364 = sand.u32 %s122, 1
          %s365 = scalar_lea.vmem [#allocation7], %s364
          %366 = dma.done %s363, 16
        $region56: #{tpu_custom_call.1} parent=47 // pred_fallthru
          _
      $region48: #{tpu_custom_call.1} parent=5 // pred_fallthru
        _
    $region6: #{tpu_custom_call.1} parent=1 // loop_footer
      %s20 = sadd.s32 1, %s16
    $region7: #{tpu_custom_call.1} parent=1 // loop_footer_branch
      %15 = sbr.rel target = $region3
    $region8: #{tpu_custom_call.1} parent=1 // loop_exit
      _
    %367 = vsyncpa [#allocation6], 1
    %s368 = scalar_lea.sflag [#allocation6], 1
    %369 = vsyncpa %s368, 1
    %370 = vsyncpa [#allocation8], 1
    %s371 = scalar_lea.sflag [#allocation8], 1
    %372 = vsyncpa %s371, 1

</llo_original>
